<compile_context>
chip_gen: v7x
topology: tpu7x:2x2x1
jax: 0.10.0
libtpu: 0.0.40
codegen_flags: <defaults>
</compile_context>

<pallas_src>
import functools

import jax
import jax.numpy as jnp
from jax.experimental import pallas as pl
from jax.experimental.pallas import tpu as pltpu


def _round_up(x, m):
    return -(-x // m) * m


def _cp4d_slice_kernel(pts_ref, *refs, n_gray_layers, sizes, rank_pad, bound,
                       learn_gray):
    """One point-tile of low-rank 4D bilateral-grid slicing.

    pts_ref : (6, TP)  rows 0..2 = xyz, rows 3..5 = rgb    (points on lanes)
    params  : gray-MLP [W|b] packs, block-diag fac table (4*rank_pad, sum(S)),
              padded channel factor w0 (12, rank_pad)       (all resident)
    out_ref : (12, TP)
    tent_ref: (sum(S), TP) VMEM scratch for the stacked tent weights
    """
    tent_ref = refs[-1]                                   # scratch
    out_ref = refs[-2]                                    # output
    params = refs[:-2]

    pts = pts_ref[...]                                    # (6, TP)
    rgb = pts[3:6, :]                                     # (3, TP)

    # ---- rgb -> gray guidance ------------------------------------------------
    idx = 0
    if learn_gray:
        h = rgb
        for layer in range(n_gray_layers):
            pack = params[idx][...]                       # (fan_out, fan_in + 1)
            idx += 1
            fan_in = pack.shape[1] - 1
            w = pack[:, :fan_in]
            b = pack[:, fan_in:fan_in + 1]
            if layer < n_gray_layers - 1:
                # Hidden layers on the MXU (it has slack after the merged CP
                # contraction); ReLU on the VPU.
                h = jnp.dot(w, h, preferred_element_type=jnp.float32) + b
                h = jnp.maximum(h, 0.0)
            else:
                # Final (1, width) layer: cheap VPU broadcast-MACs.
                acc = b
                for j in range(fan_in):
                    acc = acc + w[:, j:j + 1] * h[j:j + 1, :]
                h = acc
        gray = jnp.tanh(2.0 * h)                          # (1, TP), EUP tanh
    else:
        w = params[idx][...]                              # (1, 3)
        idx += 1
        gray = (w[:, 0:1] * rgb[0:1, :] + w[:, 1:2] * rgb[1:2, :]
                + w[:, 2:3] * rgb[2:3, :]) * 2.0 - 1.0

    # ---- stacked tent weights for the four 1-D grid_samples -------------------
    # grid_sample(align_corners=True, border padding) == clipped-position tent
    # weights; the stacked (sum(S), TP) slab feeds one block-diagonal matmul.
    coords = (pts[0:1, :], pts[1:2, :], pts[2:3, :], gray)
    coord_scale = (1.0 / bound, 1.0 / bound, 1.0 / bound, 1.0)
    off = 0
    for mode, size in enumerate(sizes):
        half = 0.5 * (size - 1.0)
        pos = jnp.clip(coords[mode] * (coord_scale[mode] * half) + half,
                       0.0, size - 1.0)                   # (1, TP)
        k = jax.lax.broadcasted_iota(jnp.int32, (size, 1), 0).astype(jnp.float32)
        tent = jnp.maximum(0.0, 1.0 - jnp.abs(pos - k))   # (size, TP)
        tent_ref[pl.ds(off, size), :] = tent.astype(tent_ref.dtype)
        off += size                                       # offsets 0,8,24,40: 8-aligned

    fac_bd = params[idx][...]                             # (4*rank_pad, sum(S))
    w0 = params[idx + 1][...]                             # (12, rank_pad)

    # One merged contraction, then the product of the four rank blocks.
    coefs = jnp.dot(fac_bd, tent_ref[...],
                    preferred_element_type=jnp.float32)   # (4*rank_pad, TP)
    coef = (coefs[0 * rank_pad:1 * rank_pad, :]
            * coefs[1 * rank_pad:2 * rank_pad, :]
            * coefs[2 * rank_pad:3 * rank_pad, :]
            * coefs[3 * rank_pad:4 * rank_pad, :])        # (rank_pad, TP)

    out_ref[...] = jnp.dot(w0, coef.astype(w0.dtype),
                           preferred_element_type=jnp.float32).astype(out_ref.dtype)


def bilateral_grid_cp4d_slice(pts, gray_params, facs, w0, *, bound,
                              learn_gray=True, tile_p=16384,
                              mxu_dtype=jnp.float32):
    """pts: (6, P) f32 (xyz rows, then rgb rows) -> (12, P) sliced affines."""
    P = pts.shape[1]
    rank = w0.shape[1]
    rank_pad = _round_up(rank, 8)                 # 8-aligned rank blocks => all
    sizes = tuple(int(f.shape[1]) for f in facs)  # sublane slices stay vreg-aligned
    s_total = sum(sizes)

    # Host-side packing: block-diagonal factor table + zero-padded channel factor.
    fac_bd = jnp.zeros((4 * rank_pad, s_total), jnp.float32)
    off = 0
    for i, f in enumerate(facs):
        fac_bd = fac_bd.at[i * rank_pad:i * rank_pad + rank,
                           off:off + sizes[i]].set(f.astype(jnp.float32))
        off += sizes[i]
    w0_pad = jnp.zeros((12, rank_pad), jnp.float32).at[:, :rank].set(
        w0.astype(jnp.float32))

    if learn_gray:
        param_arrays = [jnp.concatenate([w, b.reshape(-1, 1)], axis=1)
                        for (w, b) in gray_params]        # per-layer [W | b]
        n_gray_layers = len(gray_params)
    else:
        param_arrays = [gray_params]                      # single (1, 3) weight
        n_gray_layers = 0
    param_arrays += [fac_bd.astype(mxu_dtype), w0_pad.astype(mxu_dtype)]

    # Tile sizing: big lane-dense tiles amortize per-step overhead; cap at
    # ceil(P/2) so the grid has >= 2 steps for the v7x two-TensorCore split.
    TP = max(128, min(_round_up(tile_p, 128),
                      _round_up(max((P + 1) // 2, 1), 128)))
    P_pad = _round_up(max(P, 1), TP)
    if P_pad != P:
        pts = jnp.pad(pts, ((0, 0), (0, P_pad - P)))

    kernel = functools.partial(
        _cp4d_slice_kernel, n_gray_layers=n_gray_layers, sizes=sizes,
        rank_pad=rank_pad, bound=float(bound), learn_gray=learn_gray)

    in_specs = [pl.BlockSpec((6, TP), lambda p: (0, p))]
    for arr in param_arrays:
        # Tiny parameter tables: full-array blocks, resident across the grid.
        in_specs.append(pl.BlockSpec(arr.shape, lambda p: (0, 0)))

    out = pl.pallas_call(
        kernel,
        out_shape=jax.ShapeDtypeStruct((12, P_pad), jnp.float32),
        grid_spec=pltpu.PrefetchScalarGridSpec(
            num_scalar_prefetch=0,
            grid=(P_pad // TP,),
            in_specs=in_specs,
            out_specs=pl.BlockSpec((12, TP), lambda p: (0, p)),
            scratch_shapes=[pltpu.VMEM((s_total, TP), mxu_dtype)],
        ),
        compiler_params=pltpu.CompilerParams(
            dimension_semantics=("parallel",),
            vmem_limit_bytes=32 * 1024 * 1024),
    )(pts, *param_arrays)
    return out[:, :P]


class BilateralGridCP4D:
    """JAX/Pallas port of the PyTorch BilateralGridCP4D forward pass."""

    def __init__(self, grid_X=16, grid_Y=16, grid_Z=16, grid_W=8, rank=5,
                 learn_gray=True, gray_mlp_width=8, gray_mlp_depth=2,
                 init_noise_scale=1e-6, bound=2.0, key=None):
        self.grid_X, self.grid_Y = grid_X, grid_Y
        self.grid_Z, self.grid_W = grid_Z, grid_W
        self.rank = rank
        self.learn_gray = learn_gray
        self.gray_mlp_width = gray_mlp_width
        self.gray_mlp_depth = gray_mlp_depth
        self.bound = bound

        if key is None:
            key = jax.random.PRNGKey(0)
        keys = jax.random.split(key, 5 + 2 * gray_mlp_depth)

        # TODO(synk): tensorly.decomposition.parafac of the (identity + 1e-6
        # noise) grid is replaced by the exact rank-1 identity factorization
        # plus a deterministic synthetic perturbation (the factors are trainable
        # parameters; the forward slicing semantics are unchanged).
        ident = jnp.array([1.0, 0, 0, 0, 0, 1.0, 0, 0, 0, 0, 1.0, 0], jnp.float32)
        w0 = jnp.concatenate(
            [ident[:, None], jnp.zeros((12, rank - 1), jnp.float32)], axis=1)
        self.w0 = w0 + 0.3 * jax.random.normal(keys[0], (12, rank), jnp.float32)

        # CP modes 1..4 of the (12, W, Z, Y, X) tensor -> sizes (W, Z, Y, X).
        sizes = (grid_W, grid_Z, grid_Y, grid_X)
        self.fac_inits = []   # buffers  fac_{i}_init  (stored as (rank, S_i))
        self.fac_resids = []  # params   fac_{i}       (zero-init; perturbed here
        #                       to mimic a trained state so the test is non-trivial)
        for i, s in enumerate(sizes):
            init = jnp.concatenate(
                [jnp.ones((1, s), jnp.float32),
                 jnp.zeros((rank - 1, s), jnp.float32)], axis=0)
            self.fac_inits.append(init)
            self.fac_resids.append(
                0.5 * jax.random.normal(keys[1 + i], (rank, s), jnp.float32))

        if learn_gray:
            widths = [3] + [gray_mlp_width] * (gray_mlp_depth - 1) + [1]
            self.gray_layers = []
            for li in range(gray_mlp_depth):
                fan_in, fan_out = widths[li], widths[li + 1]
                w = jax.random.normal(keys[5 + 2 * li], (fan_out, fan_in),
                                      jnp.float32) / jnp.sqrt(float(fan_in))
                b = 0.1 * jax.random.normal(keys[6 + 2 * li], (fan_out,),
                                            jnp.float32)
                self.gray_layers.append((w, b))
        else:
            self.rgb2gray_weight = jnp.array([[0.299, 0.587, 0.114]], jnp.float32)

    def __call__(self, xyz, rgb):
        sh = xyz.shape
        assert sh[-1] == 3 and rgb.shape[-1] == 3
        xyz_flat = jnp.reshape(xyz, (-1, 3)).astype(jnp.float32)
        rgb_flat = jnp.reshape(rgb, (-1, 3)).astype(jnp.float32)
        # Lane-dense packing (features on sublanes, points on lanes); one
        # wrapper-side transpose in, one out.
        # TODO(synk): the reference's (..., 3, 4) return contract forces the
        # final transpose back through HBM; fusing the downstream affine
        # application (mat @ [r,g,b,1]) into the kernel would keep everything
        # lane-dense end-to-end but changes the module's output signature.
        pts = jnp.concatenate([xyz_flat, rgb_flat], axis=1).T       # (6, P)
        facs = [init + resid
                for init, resid in zip(self.fac_inits, self.fac_resids)]
        gray_params = (self.gray_layers if self.learn_gray
                       else self.rgb2gray_weight)
        mat = bilateral_grid_cp4d_slice(
            pts, gray_params, facs, self.w0,
            bound=self.bound, learn_gray=self.learn_gray)           # (12, P)
        return mat.T.reshape(*sh[:-1], 3, 4)

    # TODO(synk): tv_loss (total_variation_loss over the CP factors) is a
    # training-time regularizer, not part of the forward slicing path; it is
    # not implemented as a Pallas kernel.


def _ref_forward(module, xyz, rgb):
    """Pure-JAX gather-based reference reproducing the PyTorch forward."""
    sh = xyz.shape
    xyz_f = xyz.reshape(-1, 3).astype(jnp.float32) / module.bound
    rgb_f = rgb.reshape(-1, 3).astype(jnp.float32)

    if module.learn_gray:
        h = rgb_f
        for li, (w, b) in enumerate(module.gray_layers):
            h = jnp.dot(h, w.T, precision=jax.lax.Precision.HIGHEST) + b
            if li < len(module.gray_layers) - 1:
                h = jnp.maximum(h, 0.0)
        gray = jnp.tanh(2.0 * h)                                    # (P, 1)
    else:
        gray = rgb_f @ module.rgb2gray_weight.T * 2.0 - 1.0
    xyzw = jnp.concatenate([xyz_f, gray], axis=-1)                  # (P, 4)

    coef = 1.0
    for mode in range(4):
        fac = module.fac_inits[mode] + module.fac_resids[mode]      # (rank, S)
        S = fac.shape[1]
        pos = jnp.clip((xyzw[:, mode] + 1.0) * 0.5 * (S - 1.0), 0.0, S - 1.0)
        i0 = jnp.floor(pos).astype(jnp.int32)
        i1 = jnp.minimum(i0 + 1, S - 1)
        t = pos - i0.astype(jnp.float32)
        v = fac[:, i0] * (1.0 - t) + fac[:, i1] * t                 # (rank, P)
        coef = coef * v
    mat = jnp.dot(module.w0, coef,
                  precision=jax.lax.Precision.HIGHEST).T            # (P, 12)
    return mat.reshape(*sh[:-1], 3, 4)


if __name__ == "__main__":
    key = jax.random.PRNGKey(0)
    k_mod, k_xyz, k_rgb = jax.random.split(key, 3)

    bg = BilateralGridCP4D(grid_X=16, grid_Y=16, grid_Z=16, grid_W=8, rank=5,
                           learn_gray=True, gray_mlp_width=8, gray_mlp_depth=2,
                           bound=2.0, key=k_mod)

    B, Hh, Ww = 2, 16, 16                     # (..., 3) inputs -> P = 512 points
    xyz = jax.random.uniform(k_xyz, (B, Hh, Ww, 3), jnp.float32,
                             minval=-2.0, maxval=2.0)
    rgb = jax.random.uniform(k_rgb, (B, Hh, Ww, 3), jnp.float32)

    out = bg(xyz, rgb)                        # (B, Hh, Ww, 3, 4)
    out = jax.block_until_ready(out)
    assert out.shape == (B, Hh, Ww, 3, 4), out.shape

    ref = _ref_forward(bg, xyz, rgb)
    err = float(jnp.max(jnp.abs(out - ref)))
    assert err < 1e-3, f"max abs error {err}"

    print("KERNEL_OK")
</pallas_src>

<mosaic_0001>
module attributes {stable_mosaic.version = 11 : i64} {
  func.func @_cp4d_slice_kernel(%arg0: i32, %arg1: memref<6x256xf32, #tpu.memory_space<vmem>>, %arg2: memref<8x4xf32, #tpu.memory_space<vmem>>, %arg3: memref<1x9xf32, #tpu.memory_space<vmem>>, %arg4: memref<32x56xf32, #tpu.memory_space<vmem>>, %arg5: memref<12x8xf32, #tpu.memory_space<vmem>>, %arg6: memref<12x256xf32, #tpu.memory_space<vmem>>, %arg7: memref<56x256xf32, #tpu.memory_space<vmem>>) attributes {dimension_semantics = [#tpu.dimension_semantics<parallel>], iteration_bounds = array<i64: 2>, scalar_prefetch = 0 : i64, scratch_operands = 1 : i64, tpu.core_type = #tpu.core_type<tc>, window_params = [{transform_indices = @transform_0, window_bounds = array<i64: 6, 256>}, {pipeline_mode = #tpu.pipeline_mode<synchronous>, transform_indices = @transform_1, window_bounds = array<i64: 8, 4>}, {pipeline_mode = #tpu.pipeline_mode<synchronous>, transform_indices = @transform_2, window_bounds = array<i64: 1, 9>}, {pipeline_mode = #tpu.pipeline_mode<synchronous>, transform_indices = @transform_3, window_bounds = array<i64: 32, 56>}, {pipeline_mode = #tpu.pipeline_mode<synchronous>, transform_indices = @transform_4, window_bounds = array<i64: 12, 8>}, {transform_indices = @transform_5, window_bounds = array<i64: 12, 256>}]} {
    %c0 = arith.constant 0 : index
    %c0_0 = arith.constant 0 : index
    %0 = vector.load %arg1[%c0, %c0_0] : memref<6x256xf32, #tpu.memory_space<vmem>>, vector<6x256xf32>
    %1 = vector.extract_strided_slice %0 {offsets = [3, 0], sizes = [3, 256], strides = [1, 1]} : vector<6x256xf32> to vector<3x256xf32>
    %c0_1 = arith.constant 0 : index
    %c0_2 = arith.constant 0 : index
    %2 = vector.load %arg2[%c0_1, %c0_2] : memref<8x4xf32, #tpu.memory_space<vmem>>, vector<8x4xf32>
    %3 = vector.extract_strided_slice %2 {offsets = [0, 0], sizes = [8, 3], strides = [1, 1]} : vector<8x4xf32> to vector<8x3xf32>
    %4 = vector.extract_strided_slice %2 {offsets = [0, 3], sizes = [8, 1], strides = [1, 1]} : vector<8x4xf32> to vector<8x1xf32>
    %cst = arith.constant dense<0.000000e+00> : vector<8x256xf32>
    %5 = tpu.matmul %3, %1, %cst {dimension_numbers = #tpu.dot_dimension_numbers<[1], [0], [0], [1], [0, 0, 1, 1], [], []>} : vector<8x3xf32>, vector<3x256xf32>, vector<8x256xf32> -> vector<8x256xf32>
    %6 = vector.broadcast %4 : vector<8x1xf32> to vector<8x256xf32>
    %7 = arith.addf %5, %6 : vector<8x256xf32>
    %cst_3 = arith.constant 0.000000e+00 : f32
    %8 = vector.broadcast %cst_3 : f32 to vector<8x256xf32>
    %9 = arith.maximumf %7, %8 : vector<8x256xf32>
    %c0_4 = arith.constant 0 : index
    %c0_5 = arith.constant 0 : index
    %10 = vector.load %arg3[%c0_4, %c0_5] : memref<1x9xf32, #tpu.memory_space<vmem>>, vector<1x9xf32>
    %11 = vector.extract_strided_slice %10 {offsets = [0, 0], sizes = [1, 8], strides = [1, 1]} : vector<1x9xf32> to vector<1x8xf32>
    %12 = vector.extract_strided_slice %10 {offsets = [0, 8], sizes = [1, 1], strides = [1, 1]} : vector<1x9xf32> to vector<1x1xf32>
    %13 = vector.extract_strided_slice %11 {offsets = [0, 0], sizes = [1, 1], strides = [1, 1]} : vector<1x8xf32> to vector<1x1xf32>
    %14 = vector.extract_strided_slice %9 {offsets = [0, 0], sizes = [1, 256], strides = [1, 1]} : vector<8x256xf32> to vector<1x256xf32>
    %15 = vector.broadcast %13 : vector<1x1xf32> to vector<1x256xf32>
    %16 = arith.mulf %15, %14 : vector<1x256xf32>
    %17 = vector.broadcast %12 : vector<1x1xf32> to vector<1x256xf32>
    %18 = arith.addf %17, %16 : vector<1x256xf32>
    %19 = vector.extract_strided_slice %11 {offsets = [0, 1], sizes = [1, 1], strides = [1, 1]} : vector<1x8xf32> to vector<1x1xf32>
    %20 = vector.extract_strided_slice %9 {offsets = [1, 0], sizes = [1, 256], strides = [1, 1]} : vector<8x256xf32> to vector<1x256xf32>
    %21 = vector.broadcast %19 : vector<1x1xf32> to vector<1x256xf32>
    %22 = arith.mulf %21, %20 : vector<1x256xf32>
    %23 = arith.addf %18, %22 : vector<1x256xf32>
    %24 = vector.extract_strided_slice %11 {offsets = [0, 2], sizes = [1, 1], strides = [1, 1]} : vector<1x8xf32> to vector<1x1xf32>
    %25 = vector.extract_strided_slice %9 {offsets = [2, 0], sizes = [1, 256], strides = [1, 1]} : vector<8x256xf32> to vector<1x256xf32>
    %26 = vector.broadcast %24 : vector<1x1xf32> to vector<1x256xf32>
    %27 = arith.mulf %26, %25 : vector<1x256xf32>
    %28 = arith.addf %23, %27 : vector<1x256xf32>
    %29 = vector.extract_strided_slice %11 {offsets = [0, 3], sizes = [1, 1], strides = [1, 1]} : vector<1x8xf32> to vector<1x1xf32>
    %30 = vector.extract_strided_slice %9 {offsets = [3, 0], sizes = [1, 256], strides = [1, 1]} : vector<8x256xf32> to vector<1x256xf32>
    %31 = vector.broadcast %29 : vector<1x1xf32> to vector<1x256xf32>
    %32 = arith.mulf %31, %30 : vector<1x256xf32>
    %33 = arith.addf %28, %32 : vector<1x256xf32>
    %34 = vector.extract_strided_slice %11 {offsets = [0, 4], sizes = [1, 1], strides = [1, 1]} : vector<1x8xf32> to vector<1x1xf32>
    %35 = vector.extract_strided_slice %9 {offsets = [4, 0], sizes = [1, 256], strides = [1, 1]} : vector<8x256xf32> to vector<1x256xf32>
    %36 = vector.broadcast %34 : vector<1x1xf32> to vector<1x256xf32>
    %37 = arith.mulf %36, %35 : vector<1x256xf32>
    %38 = arith.addf %33, %37 : vector<1x256xf32>
    %39 = vector.extract_strided_slice %11 {offsets = [0, 5], sizes = [1, 1], strides = [1, 1]} : vector<1x8xf32> to vector<1x1xf32>
    %40 = vector.extract_strided_slice %9 {offsets = [5, 0], sizes = [1, 256], strides = [1, 1]} : vector<8x256xf32> to vector<1x256xf32>
    %41 = vector.broadcast %39 : vector<1x1xf32> to vector<1x256xf32>
    %42 = arith.mulf %41, %40 : vector<1x256xf32>
    %43 = arith.addf %38, %42 : vector<1x256xf32>
    %44 = vector.extract_strided_slice %11 {offsets = [0, 6], sizes = [1, 1], strides = [1, 1]} : vector<1x8xf32> to vector<1x1xf32>
    %45 = vector.extract_strided_slice %9 {offsets = [6, 0], sizes = [1, 256], strides = [1, 1]} : vector<8x256xf32> to vector<1x256xf32>
    %46 = vector.broadcast %44 : vector<1x1xf32> to vector<1x256xf32>
    %47 = arith.mulf %46, %45 : vector<1x256xf32>
    %48 = arith.addf %43, %47 : vector<1x256xf32>
    %49 = vector.extract_strided_slice %11 {offsets = [0, 7], sizes = [1, 1], strides = [1, 1]} : vector<1x8xf32> to vector<1x1xf32>
    %50 = vector.extract_strided_slice %9 {offsets = [7, 0], sizes = [1, 256], strides = [1, 1]} : vector<8x256xf32> to vector<1x256xf32>
    %51 = vector.broadcast %49 : vector<1x1xf32> to vector<1x256xf32>
    %52 = arith.mulf %51, %50 : vector<1x256xf32>
    %53 = arith.addf %48, %52 : vector<1x256xf32>
    %cst_6 = arith.constant 2.000000e+00 : f32
    %54 = vector.broadcast %cst_6 : f32 to vector<1x256xf32>
    %55 = arith.mulf %54, %53 : vector<1x256xf32>
    %56 = math.tanh %55 : vector<1x256xf32>
    %57 = vector.extract_strided_slice %0 {offsets = [0, 0], sizes = [1, 256], strides = [1, 1]} : vector<6x256xf32> to vector<1x256xf32>
    %58 = vector.extract_strided_slice %0 {offsets = [1, 0], sizes = [1, 256], strides = [1, 1]} : vector<6x256xf32> to vector<1x256xf32>
    %59 = vector.extract_strided_slice %0 {offsets = [2, 0], sizes = [1, 256], strides = [1, 1]} : vector<6x256xf32> to vector<1x256xf32>
    %cst_7 = arith.constant 1.750000e+00 : f32
    %60 = vector.broadcast %cst_7 : f32 to vector<1x256xf32>
    %61 = arith.mulf %57, %60 : vector<1x256xf32>
    %cst_8 = arith.constant 3.500000e+00 : f32
    %62 = vector.broadcast %cst_8 : f32 to vector<1x256xf32>
    %63 = arith.addf %61, %62 : vector<1x256xf32>
    %cst_9 = arith.constant 0.000000e+00 : f32
    %cst_10 = arith.constant 7.000000e+00 : f32
    %64 = vector.broadcast %cst_9 : f32 to vector<1x256xf32>
    %65 = arith.maximumf %64, %63 : vector<1x256xf32>
    %66 = vector.broadcast %cst_10 : f32 to vector<1x256xf32>
    %67 = arith.minimumf %66, %65 : vector<1x256xf32>
    %68 = tpu.iota {dimensions = array<i32: 0>} : vector<8x1xi32>
    %69 = arith.sitofp %68 : vector<8x1xi32> to vector<8x1xf32>
    %70 = vector.broadcast %67 : vector<1x256xf32> to vector<8x256xf32>
    %71 = vector.broadcast %69 : vector<8x1xf32> to vector<8x256xf32>
    %72 = arith.subf %70, %71 : vector<8x256xf32>
    %73 = math.absf %72 : vector<8x256xf32>
    %cst_11 = arith.constant 1.000000e+00 : f32
    %74 = vector.broadcast %cst_11 : f32 to vector<8x256xf32>
    %75 = arith.subf %74, %73 : vector<8x256xf32>
    %cst_12 = arith.constant 0.000000e+00 : f32
    %76 = vector.broadcast %cst_12 : f32 to vector<8x256xf32>
    %77 = arith.maximumf %76, %75 : vector<8x256xf32>
    %c0_13 = arith.constant 0 : index
    %c0_14 = arith.constant 0 : index
    %78 = vector.load %arg7[%c0_13, %c0_14] : memref<56x256xf32, #tpu.memory_space<vmem>>, vector<8x256xf32>
    tpu.vector_store %arg7[%c0_13, %c0_14], %77 {strides = array<i32>} : memref<56x256xf32, #tpu.memory_space<vmem>>, vector<8x256xf32>,
    %cst_15 = arith.constant 3.750000e+00 : f32
    %79 = vector.broadcast %cst_15 : f32 to vector<1x256xf32>
    %80 = arith.mulf %58, %79 : vector<1x256xf32>
    %cst_16 = arith.constant 7.500000e+00 : f32
    %81 = vector.broadcast %cst_16 : f32 to vector<1x256xf32>
    %82 = arith.addf %80, %81 : vector<1x256xf32>
    %cst_17 = arith.constant 0.000000e+00 : f32
    %cst_18 = arith.constant 1.500000e+01 : f32
    %83 = vector.broadcast %cst_17 : f32 to vector<1x256xf32>
    %84 = arith.maximumf %83, %82 : vector<1x256xf32>
    %85 = vector.broadcast %cst_18 : f32 to vector<1x256xf32>
    %86 = arith.minimumf %85, %84 : vector<1x256xf32>
    %87 = tpu.iota {dimensions = array<i32: 0>} : vector<16x1xi32>
    %88 = arith.sitofp %87 : vector<16x1xi32> to vector<16x1xf32>
    %89 = vector.broadcast %86 : vector<1x256xf32> to vector<16x256xf32>
    %90 = vector.broadcast %88 : vector<16x1xf32> to vector<16x256xf32>
    %91 = arith.subf %89, %90 : vector<16x256xf32>
    %92 = math.absf %91 : vector<16x256xf32>
    %cst_19 = arith.constant 1.000000e+00 : f32
    %93 = vector.broadcast %cst_19 : f32 to vector<16x256xf32>
    %94 = arith.subf %93, %92 : vector<16x256xf32>
    %cst_20 = arith.constant 0.000000e+00 : f32
    %95 = vector.broadcast %cst_20 : f32 to vector<16x256xf32>
    %96 = arith.maximumf %95, %94 : vector<16x256xf32>
    %c8 = arith.constant 8 : index
    %c0_21 = arith.constant 0 : index
    %97 = vector.load %arg7[%c8, %c0_21] : memref<56x256xf32, #tpu.memory_space<vmem>>, vector<16x256xf32>
    tpu.vector_store %arg7[%c8, %c0_21], %96 {strides = array<i32>} : memref<56x256xf32, #tpu.memory_space<vmem>>, vector<16x256xf32>,
    %cst_22 = arith.constant 3.750000e+00 : f32
    %98 = vector.broadcast %cst_22 : f32 to vector<1x256xf32>
    %99 = arith.mulf %59, %98 : vector<1x256xf32>
    %cst_23 = arith.constant 7.500000e+00 : f32
    %100 = vector.broadcast %cst_23 : f32 to vector<1x256xf32>
    %101 = arith.addf %99, %100 : vector<1x256xf32>
    %cst_24 = arith.constant 0.000000e+00 : f32
    %cst_25 = arith.constant 1.500000e+01 : f32
    %102 = vector.broadcast %cst_24 : f32 to vector<1x256xf32>
    %103 = arith.maximumf %102, %101 : vector<1x256xf32>
    %104 = vector.broadcast %cst_25 : f32 to vector<1x256xf32>
    %105 = arith.minimumf %104, %103 : vector<1x256xf32>
    %106 = tpu.iota {dimensions = array<i32: 0>} : vector<16x1xi32>
    %107 = arith.sitofp %106 : vector<16x1xi32> to vector<16x1xf32>
    %108 = vector.broadcast %105 : vector<1x256xf32> to vector<16x256xf32>
    %109 = vector.broadcast %107 : vector<16x1xf32> to vector<16x256xf32>
    %110 = arith.subf %108, %109 : vector<16x256xf32>
    %111 = math.absf %110 : vector<16x256xf32>
    %cst_26 = arith.constant 1.000000e+00 : f32
    %112 = vector.broadcast %cst_26 : f32 to vector<16x256xf32>
    %113 = arith.subf %112, %111 : vector<16x256xf32>
    %cst_27 = arith.constant 0.000000e+00 : f32
    %114 = vector.broadcast %cst_27 : f32 to vector<16x256xf32>
    %115 = arith.maximumf %114, %113 : vector<16x256xf32>
    %c24 = arith.constant 24 : index
    %c0_28 = arith.constant 0 : index
    %116 = vector.load %arg7[%c24, %c0_28] : memref<56x256xf32, #tpu.memory_space<vmem>>, vector<16x256xf32>
    tpu.vector_store %arg7[%c24, %c0_28], %115 {strides = array<i32>} : memref<56x256xf32, #tpu.memory_space<vmem>>, vector<16x256xf32>,
    %cst_29 = arith.constant 7.500000e+00 : f32
    %117 = vector.broadcast %cst_29 : f32 to vector<1x256xf32>
    %118 = arith.mulf %56, %117 : vector<1x256xf32>
    %cst_30 = arith.constant 7.500000e+00 : f32
    %119 = vector.broadcast %cst_30 : f32 to vector<1x256xf32>
    %120 = arith.addf %118, %119 : vector<1x256xf32>
    %cst_31 = arith.constant 0.000000e+00 : f32
    %cst_32 = arith.constant 1.500000e+01 : f32
    %121 = vector.broadcast %cst_31 : f32 to vector<1x256xf32>
    %122 = arith.maximumf %121, %120 : vector<1x256xf32>
    %123 = vector.broadcast %cst_32 : f32 to vector<1x256xf32>
    %124 = arith.minimumf %123, %122 : vector<1x256xf32>
    %125 = tpu.iota {dimensions = array<i32: 0>} : vector<16x1xi32>
    %126 = arith.sitofp %125 : vector<16x1xi32> to vector<16x1xf32>
    %127 = vector.broadcast %124 : vector<1x256xf32> to vector<16x256xf32>
    %128 = vector.broadcast %126 : vector<16x1xf32> to vector<16x256xf32>
    %129 = arith.subf %127, %128 : vector<16x256xf32>
    %130 = math.absf %129 : vector<16x256xf32>
    %cst_33 = arith.constant 1.000000e+00 : f32
    %131 = vector.broadcast %cst_33 : f32 to vector<16x256xf32>
    %132 = arith.subf %131, %130 : vector<16x256xf32>
    %cst_34 = arith.constant 0.000000e+00 : f32
    %133 = vector.broadcast %cst_34 : f32 to vector<16x256xf32>
    %134 = arith.maximumf %133, %132 : vector<16x256xf32>
    %c40 = arith.constant 40 : index
    %c0_35 = arith.constant 0 : index
    %135 = vector.load %arg7[%c40, %c0_35] : memref<56x256xf32, #tpu.memory_space<vmem>>, vector<16x256xf32>
    tpu.vector_store %arg7[%c40, %c0_35], %134 {strides = array<i32>} : memref<56x256xf32, #tpu.memory_space<vmem>>, vector<16x256xf32>,
    %c0_36 = arith.constant 0 : index
    %c0_37 = arith.constant 0 : index
    %136 = vector.load %arg4[%c0_36, %c0_37] : memref<32x56xf32, #tpu.memory_space<vmem>>, vector<32x56xf32>
    %c0_38 = arith.constant 0 : index
    %c0_39 = arith.constant 0 : index
    %137 = vector.load %arg5[%c0_38, %c0_39] : memref<12x8xf32, #tpu.memory_space<vmem>>, vector<12x8xf32>
    %c0_40 = arith.constant 0 : index
    %c0_41 = arith.constant 0 : index
    %138 = vector.load %arg7[%c0_40, %c0_41] : memref<56x256xf32, #tpu.memory_space<vmem>>, vector<56x256xf32>
    %cst_42 = arith.constant dense<0.000000e+00> : vector<32x256xf32>
    %139 = tpu.matmul %136, %138, %cst_42 {dimension_numbers = #tpu.dot_dimension_numbers<[1], [0], [0], [1], [0, 0, 1, 1], [], []>} : vector<32x56xf32>, vector<56x256xf32>, vector<32x256xf32> -> vector<32x256xf32>
    %140 = vector.extract_strided_slice %139 {offsets = [0, 0], sizes = [8, 256], strides = [1, 1]} : vector<32x256xf32> to vector<8x256xf32>
    %141 = vector.extract_strided_slice %139 {offsets = [8, 0], sizes = [8, 256], strides = [1, 1]} : vector<32x256xf32> to vector<8x256xf32>
    %142 = arith.mulf %140, %141 : vector<8x256xf32>
    %143 = vector.extract_strided_slice %139 {offsets = [16, 0], sizes = [8, 256], strides = [1, 1]} : vector<32x256xf32> to vector<8x256xf32>
    %144 = arith.mulf %142, %143 : vector<8x256xf32>
    %145 = vector.extract_strided_slice %139 {offsets = [24, 0], sizes = [8, 256], strides = [1, 1]} : vector<32x256xf32> to vector<8x256xf32>
    %146 = arith.mulf %144, %145 : vector<8x256xf32>
    %cst_43 = arith.constant dense<0.000000e+00> : vector<12x256xf32>
    %147 = tpu.matmul %137, %146, %cst_43 {dimension_numbers = #tpu.dot_dimension_numbers<[1], [0], [0], [1], [0, 0, 1, 1], [], []>} : vector<12x8xf32>, vector<8x256xf32>, vector<12x256xf32> -> vector<12x256xf32>
    %c0_44 = arith.constant 0 : index
    %c0_45 = arith.constant 0 : index
    %148 = vector.load %arg6[%c0_44, %c0_45] : memref<12x256xf32, #tpu.memory_space<vmem>>, vector<12x256xf32>
    tpu.vector_store %arg6[%c0_44, %c0_45], %147 {strides = array<i32>} : memref<12x256xf32, #tpu.memory_space<vmem>>, vector<12x256xf32>,
    return
  }
  func.func @transform_0(%arg0: i32) -> (i32, i32) {
    %c0_i32 = arith.constant 0 : i32
    %c0_i32_0 = arith.constant 0 : i32
    return %c0_i32, %arg0 : i32, i32
  }
  func.func @transform_1(%arg0: i32) -> (i32, i32) {
    %c0_i32 = arith.constant 0 : i32
    %c0_i32_0 = arith.constant 0 : i32
    %c0_i32_1 = arith.constant 0 : i32
    return %c0_i32, %c0_i32_0 : i32, i32
  }
  func.func @transform_2(%arg0: i32) -> (i32, i32) {
    %c0_i32 = arith.constant 0 : i32
    %c0_i32_0 = arith.constant 0 : i32
    %c0_i32_1 = arith.constant 0 : i32
    return %c0_i32, %c0_i32_0 : i32, i32
  }
  func.func @transform_3(%arg0: i32) -> (i32, i32) {
    %c0_i32 = arith.constant 0 : i32
    %c0_i32_0 = arith.constant 0 : i32
    %c0_i32_1 = arith.constant 0 : i32
    return %c0_i32, %c0_i32_0 : i32, i32
  }
  func.func @transform_4(%arg0: i32) -> (i32, i32) {
    %c0_i32 = arith.constant 0 : i32
    %c0_i32_0 = arith.constant 0 : i32
    %c0_i32_1 = arith.constant 0 : i32
    return %c0_i32, %c0_i32_0 : i32, i32
  }
  func.func @transform_5(%arg0: i32) -> (i32, i32) {
    %c0_i32 = arith.constant 0 : i32
    %c0_i32_0 = arith.constant 0 : i32
    return %c0_i32, %arg0 : i32, i32
  }
}

</mosaic_0001>

<llo_original>
// kernel: tpu_custom_call.1
$region0: #{tpu_custom_call.1}
  #allocation0 [shape = 'u32[]', space=smem, size = 0x4, offset = 0x4, fixed_abs, tag = 'smem constant byte address 0x4 - core index']
  #allocation1 [shape = 'u32[144,128]{1,0:T(1,128)}', space=vmem, size = 0x12000, scoped, tag = 'internal scratch']
  #allocation2 [shape = 'f32[56,256]{1,0:T(8,128)}', space=vmem, size = 0xe000, scoped, tag = 'scratch operand']
  %s0 = inlined_call_operand.vmem [shape: f32[6,512], index: 0, kind: input, shape index: {}]
  %s1 = inlined_call_operand.vmem [shape: f32[8,4], index: 1, kind: input, shape index: {}]
  %s2 = inlined_call_operand.vmem [shape: f32[1,9], index: 2, kind: input, shape index: {}]
  %s3 = inlined_call_operand.hbm [shape: f32[32,56], index: 3, kind: input, shape index: {}]
  %s4 = inlined_call_operand.vmem [shape: f32[12,8], index: 4, kind: input, shape index: {}]
  %s5 = inlined_call_operand.hbm [shape: f32[12,512], index: 5, kind: output, shape index: {}]
  %s6 = sld [smem:[#allocation0]]
  $region57: #{tpu_custom_call.1} parent=0
    _
  %s8 = ssub.s32 1, %s6
  %s9 = scalar_select 0, %s8, %s6
  $region1: #{tpu_custom_call.1} parent=0
    #allocation3 [shape = 'u8[16384]{0}', space=vmem, size = 0x4000, scoped, tag = 'input window, operand 3, single buffered']
    #allocation4 [shape = 's32[2]{0}', space=sflag, size = 0x8, scoped, tag = 'scoped memory for tpu_custom_call.1']
    #allocation5 [shape = 's32[2]{0}', space=sflag, size = 0x8, scoped, tag = 'scoped memory for tpu_custom_call.1']
    #allocation6 [shape = 'u8[32768]{0}', space=vmem, size = 0x8000, scoped, tag = 'output window, operand 0']
    %10 = vsyncpa [#allocation4], 0
    %11 = vsyncpa [#allocation5], 0
    %s12 = scalar_lea.sflag [#allocation5], 1
    %13 = vsyncpa %s12, 0
    loop: start=0, step=1, limit=4
    $region2: #{tpu_custom_call.1} parent=1 // loop_pre_header
      _
    $region3: #{tpu_custom_call.1} parent=1 // loop_header
      %s15 = sphi 0, %s19
      %p16 = scmp.ge.s32.totalorder %s15, 4
      %s25 = sphi 0, %s27
      %s28 = sphi 0, %s25
      %s29 = sphi 0, %s28
      %s45 = sphi 0, %s29
      %s49 = sphi 0, %s49
      %s51 = sphi 0, %s49
      %s52 = sphi 0, %s51
      %s66 = sphi 0, %s52
      %s70 = sphi 0, %s70
      %s72 = sphi 0, %s70
      %s73 = sphi 0, %s72
      %s87 = sphi 0, %s73
      %s91 = sphi 0, %s91
      %s93 = sphi 0, %s91
      %s94 = sphi 0, %s93
      %s108 = sphi 0, %s94
      %s112 = sphi 0, %s112
      %s114 = sphi 0, %s112
      %s115 = sphi 0, %s114
      %s129 = sphi 0, %s115
      %s135 = sphi 0, %s137
      %s138 = sphi 0, %s135
      %s139 = sphi 0, %s138
      %s155 = sphi 0, %s139
    $region4: #{tpu_custom_call.1} parent=1 // loop_header_branch
      %18 = sbr.rel (%p16) target = $region8
    $region5: #{tpu_custom_call.1} parent=1 // loop_body
      %s20 = ssub.s32 %s15, 1
      %s21 = ssub.s32 %s15, 2
      %s22 = sadd.s32 %s15, 1
      %s23 = ssub.s32 %s15, %s22
      %p24 = scmp.eq.s32.totalorder %s23, 0
      %s26 = sadd.s32 %s25, 1
      %s27 = scalar_select %p24, %s25, %s26
      %p30 = pneg %p24
      %p31 = scmp.eq.s32.totalorder %s15, 1
      %p32 = por %p30, %p31
      %p33 = scmp.ne.s32.totalorder %s25, %s28
      %p34 = scmp.eq.s32.totalorder %s15, 0
      %p35 = por %p33, %p34
      %p36 = scmp.ne.s32.totalorder %s25, %s28
      %p37 = scmp.eq.s32.totalorder %s20, 1
      %p38 = por %p36, %p37
      %p39 = scmp.ne.s32.totalorder %s28, %s29
      %p40 = scmp.eq.s32.totalorder %s20, 0
      %p41 = por %p39, %p40
      %p42 = scmp.ne.s32.totalorder %s28, %s29
      %p43 = scmp.eq.s32.totalorder %s21, 1
      %p44 = por %p42, %p43
      %p46 = scmp.ne.s32.totalorder %s29, %s45
      %p47 = scmp.eq.s32.totalorder %s21, 0
      %p48 = por %p46, %p47
      %s50 = sadd.s32 %s49, 1
      %p53 = scmp.eq.s32.totalorder %s15, 1
      %p54 = scmp.ne.s32.totalorder %s49, %s51
      %p55 = scmp.eq.s32.totalorder %s15, 0
      %p56 = por %p54, %p55
      %p57 = scmp.ne.s32.totalorder %s49, %s51
      %p58 = scmp.eq.s32.totalorder %s20, 1
      %p59 = por %p57, %p58
      %p60 = scmp.ne.s32.totalorder %s51, %s52
      %p61 = scmp.eq.s32.totalorder %s20, 0
      %p62 = por %p60, %p61
      %p63 = scmp.ne.s32.totalorder %s51, %s52
      %p64 = scmp.eq.s32.totalorder %s21, 1
      %p65 = por %p63, %p64
      %p67 = scmp.ne.s32.totalorder %s52, %s66
      %p68 = scmp.eq.s32.totalorder %s21, 0
      %p69 = por %p67, %p68
      %s71 = sadd.s32 %s70, 1
      %p74 = scmp.eq.s32.totalorder %s15, 1
      %p75 = scmp.ne.s32.totalorder %s70, %s72
      %p76 = scmp.eq.s32.totalorder %s15, 0
      %p77 = por %p75, %p76
      %p78 = scmp.ne.s32.totalorder %s70, %s72
      %p79 = scmp.eq.s32.totalorder %s20, 1
      %p80 = por %p78, %p79
      %p81 = scmp.ne.s32.totalorder %s72, %s73
      %p82 = scmp.eq.s32.totalorder %s20, 0
      %p83 = por %p81, %p82
      %p84 = scmp.ne.s32.totalorder %s72, %s73
      %p85 = scmp.eq.s32.totalorder %s21, 1
      %p86 = por %p84, %p85
      %p88 = scmp.ne.s32.totalorder %s73, %s87
      %p89 = scmp.eq.s32.totalorder %s21, 0
      %p90 = por %p88, %p89
      %s92 = sadd.s32 %s91, 1
      %p95 = scmp.eq.s32.totalorder %s15, 1
      %p96 = scmp.ne.s32.totalorder %s91, %s93
      %p97 = scmp.eq.s32.totalorder %s15, 0
      %p98 = por %p96, %p97
      %p99 = scmp.ne.s32.totalorder %s91, %s93
      %p100 = scmp.eq.s32.totalorder %s20, 1
      %p101 = por %p99, %p100
      %p102 = scmp.ne.s32.totalorder %s93, %s94
      %p103 = scmp.eq.s32.totalorder %s20, 0
      %p104 = por %p102, %p103
      %p105 = scmp.ne.s32.totalorder %s93, %s94
      %p106 = scmp.eq.s32.totalorder %s21, 1
      %p107 = por %p105, %p106
      %p109 = scmp.ne.s32.totalorder %s94, %s108
      %p110 = scmp.eq.s32.totalorder %s21, 0
      %p111 = por %p109, %p110
      %s113 = sadd.s32 %s112, 1
      %p116 = scmp.eq.s32.totalorder %s15, 1
      %p117 = scmp.ne.s32.totalorder %s112, %s114
      %p118 = scmp.eq.s32.totalorder %s15, 0
      %p119 = por %p117, %p118
      %p120 = scmp.ne.s32.totalorder %s112, %s114
      %p121 = scmp.eq.s32.totalorder %s20, 1
      %p122 = por %p120, %p121
      %p123 = scmp.ne.s32.totalorder %s114, %s115
      %p124 = scmp.eq.s32.totalorder %s20, 0
      %p125 = por %p123, %p124
      %p126 = scmp.ne.s32.totalorder %s114, %s115
      %p127 = scmp.eq.s32.totalorder %s21, 1
      %p128 = por %p126, %p127
      %p130 = scmp.ne.s32.totalorder %s115, %s129
      %p131 = scmp.eq.s32.totalorder %s21, 0
      %p132 = por %p130, %p131
      %s133 = ssub.s32 %s15, %s22
      %p134 = scmp.eq.s32.totalorder %s133, 0
      %s136 = sadd.s32 %s135, 1
      %s137 = scalar_select %p134, %s135, %s136
      %p140 = pneg %p134
      %p141 = scmp.eq.s32.totalorder %s15, 1
      %p142 = por %p140, %p141
      %p143 = scmp.ne.s32.totalorder %s135, %s138
      %p144 = scmp.eq.s32.totalorder %s15, 0
      %p145 = por %p143, %p144
      %p146 = scmp.ne.s32.totalorder %s135, %s138
      %p147 = scmp.eq.s32.totalorder %s20, 1
      %p148 = por %p146, %p147
      %p149 = scmp.ne.s32.totalorder %s138, %s139
      %p150 = scmp.eq.s32.totalorder %s20, 0
      %p151 = por %p149, %p150
      %p152 = scmp.ne.s32.totalorder %s138, %s139
      %p153 = scmp.eq.s32.totalorder %s21, 1
      %p154 = por %p152, %p153
      %p156 = scmp.ne.s32.totalorder %s139, %s155
      %p157 = scmp.eq.s32.totalorder %s21, 0
      %p158 = por %p156, %p157
      %p159 = scmp.le.s32.totalorder 1, %s15
      %p160 = scmp.lt.s32.totalorder %s15, 3
      %p161 = pnand %p159, %p160
      %p162 = pneg %p161
      // Predicated region
      $region9: #{tpu_custom_call.1} parent=5 // pred_check
        _
      $region10: #{tpu_custom_call.1} parent=5 // pred_check_branch
        %164 = sbr.rel (%p161) target = $region12
      $region11: #{tpu_custom_call.1} parent=5 // pred_region
        %s165 = ssub.s32 %s15, 1
        // Predicated region
        $region13: #{tpu_custom_call.1} parent=11 // pred_check
          %p166 = pneg %p62
        $region14: #{tpu_custom_call.1} parent=11 // pred_check_branch
          %168 = sbr.rel (%p166) target = $region16
        $region15: #{tpu_custom_call.1} parent=11 // pred_region
          _
        $region16: #{tpu_custom_call.1} parent=11 // pred_fallthru
          _
        // Predicated region
        $region17: #{tpu_custom_call.1} parent=11 // pred_check
          %p169 = pneg %p83
        $region18: #{tpu_custom_call.1} parent=11 // pred_check_branch
          %171 = sbr.rel (%p169) target = $region20
        $region19: #{tpu_custom_call.1} parent=11 // pred_region
          _
        $region20: #{tpu_custom_call.1} parent=11 // pred_fallthru
          _
        // Predicated region
        $region21: #{tpu_custom_call.1} parent=11 // pred_check
          %p172 = pneg %p104
        $region22: #{tpu_custom_call.1} parent=11 // pred_check_branch
          %174 = sbr.rel (%p172) target = $region24
        $region23: #{tpu_custom_call.1} parent=11 // pred_region
          %s176 = ssub.s32 512, 512
          %177 = vsyncadd [#allocation4], %s176
          %s178 = sshll.u32 [#allocation3], 4
          %s179 = int_to_ptr.vmem [resolvable:$true] %s178
          %184 = dma.hbm_to_vmem [thread:$0]  %s3, 512, %s179, [#allocation4], 128, 128, 8
        $region24: #{tpu_custom_call.1} parent=11 // pred_fallthru
          _
        // Predicated region
        $region25: #{tpu_custom_call.1} parent=11 // pred_check
          %p185 = pneg %p125
        $region26: #{tpu_custom_call.1} parent=11 // pred_check_branch
          %187 = sbr.rel (%p185) target = $region28
        $region27: #{tpu_custom_call.1} parent=11 // pred_region
          _
        $region28: #{tpu_custom_call.1} parent=11 // pred_fallthru
          _
      $region12: #{tpu_custom_call.1} parent=5 // pred_fallthru
        _
      %p188 = scmp.lt.s32.totalorder %s15, 2
      // Predicated region
      $region29: #{tpu_custom_call.1} parent=5 // pred_check
        %p189 = pneg %p188
      $region30: #{tpu_custom_call.1} parent=5 // pred_check_branch
        %191 = sbr.rel (%p189) target = $region32
      $region31: #{tpu_custom_call.1} parent=5 // pred_region
        // Predicated region
        $region33: #{tpu_custom_call.1} parent=31 // pred_check
          %p192 = pneg %p35
        $region34: #{tpu_custom_call.1} parent=31 // pred_check_branch
          %194 = sbr.rel (%p192) target = $region36
        $region35: #{tpu_custom_call.1} parent=31 // pred_region
          %s195 = smul.u32 2, %s15
          %p196 = scmp.lt.s32.totalorder %s195, 3
          %s197 = scalar_select %p196, %s195, 3
          %s198 = smul.addr %s197, 8
          %s199 = scalar_lea.vmem %s0, %s198
          %s200 = smul.u32 2, %s15
        $region36: #{tpu_custom_call.1} parent=31 // pred_fallthru
          _
      $region32: #{tpu_custom_call.1} parent=5 // pred_fallthru
        _
      %p201 = scmp.le.s32.totalorder 1, %s15
      %p202 = scmp.lt.s32.totalorder %s15, 3
      %p203 = pnand %p201, %p202
      %p204 = pneg %p203
      // Predicated region
      $region37: #{tpu_custom_call.1} parent=5 // pred_check
        _
      $region38: #{tpu_custom_call.1} parent=5 // pred_check_branch
        %206 = sbr.rel (%p203) target = $region40
      $region39: #{tpu_custom_call.1} parent=5 // pred_region
        %s207 = ssub.s32 %s15, 1
        // Predicated region
        $region41: #{tpu_custom_call.1} parent=39 // pred_check
          %p208 = pneg %p104
        $region42: #{tpu_custom_call.1} parent=39 // pred_check_branch
          %210 = sbr.rel (%p208) target = $region44
        $region43: #{tpu_custom_call.1} parent=39 // pred_region
          %211 = dma.done [#allocation4], 512
        $region44: #{tpu_custom_call.1} parent=39 // pred_fallthru
          _
        %s212 = smul.u32 2, %s20
        %p213 = scmp.lt.s32.totalorder %s212, 3
        %s214 = scalar_select %p213, %s212, 3
        %s215 = smul.addr %s214, 8
        %s216 = scalar_lea.vmem %s0, %s215
        %p217 = pneg %p41
        %p218 = pneg %p38
        %p219 = pneg %p62
        %p220 = pneg %p59
        %p221 = pneg %p83
        %p222 = pneg %p80
        %p223 = pneg %p104
        %p224 = pneg %p101
        %p225 = pneg %p125
        %p226 = pneg %p122
        %p227 = pneg %p151
        %p228 = pneg %p148
        %s229 = sand.u32 %s138, 1
        %s230 = scalar_lea.sflag [#allocation5], %s229
        %s231 = sand.u32 %s138, 1
        %s232 = smul.addr %s231, 32
        %s233 = scalar_lea.vmem [#allocation6], %s232
        %s234 = smul.u32 2, %s20
        %p235 = scmp.lt.s32.totalorder %s234, 3
        %s236 = scalar_select %p235, %s234, 3
        %s237 = smul.addr %s236, 8
        %s238 = scalar_lea.vmem %s0, %s237
        %s239 = smul.u32 2, %s20
        %s240 = smul.u32 2, %s20
        %v241 = vld [vmem:[%s238] sm:$0x3f]
        %v242 = vld [vmem:[%s238 + $0x8] sm:$0x3f]
        %v243 = vld [vmem:[%s1] sm:$0xff]
        %245 = vset.pattern.permute.xlu0 3
        %246 = vperm.xlu0 %245, %v243
        %v247 = vpop.permute.xlu0 %246
        %v251 = vrot.slane %v241, 3
        %v252 = vrot.slane %v242, 3
        %vm253 = vcmask 23552
        %v254 = vsel %vm253, %v243, 0
        %vm256 = vcmask 1042432
        %v257 = vsel %vm256, %v251, 0
        %v259 = vsel %vm256, %v252, 0
        %261 = vmatprep.subr.mxu0 %v259
        %262 = vmatpush1.msra.mxu0 %v257
        %263 = vmatprep.subr.mxu0 0.0
        %264 = vmatpush1.msra.mxu0 0.0
        %265 = vmatprep.subr.mxu0 0.0
        %266 = vmatpush1.msra.mxu0 0.0
        %267 = vmatprep.subr.mxu0 0.0
        %268 = vmatpush1.msra.mxu0 0.0
        %269 = vmatprep.subr.mxu0 0.0
        %270 = vmatpush1.msra.mxu0 0.0
        %271 = vmatprep.subr.mxu0 0.0
        %272 = vmatpush1.msra.mxu0 0.0
        %273 = vmatprep.subr.mxu0 0.0
        %274 = vmatpush1.msra.mxu0 0.0
        %275 = vmatprep.subr.mxu0 0.0
        %276 = vmatpush1.msra.mxu0 0.0
        %277 = vmatprep.subr.mxu0 0.0
        %278 = vmatpush1.msra.mxu0 0.0
        %279 = vmatprep.subr.mxu0 0.0
        %280 = vmatpush1.msra.mxu0 0.0
        %281 = vmatprep.subr.mxu0 0.0
        %282 = vmatpush1.msra.mxu0 0.0
        %283 = vmatprep.subr.mxu0 0.0
        %284 = vmatpush1.msra.mxu0 0.0
        %285 = vmatprep.subr.mxu0 0.0
        %286 = vmatpush1.msra.mxu0 0.0
        %287 = vmatprep.subr.mxu0 0.0
        %288 = vmatpush1.msra.mxu0 0.0
        %289 = vmatprep.subr.mxu0 0.0
        %290 = vmatpush1.msra.mxu0 0.0
        %291 = vmatprep.subr.mxu0 0.0
        %292 = vmatpush1.msra.mxu0 0.0
        %293 = vmatprep.subr.mxu0 0.0
        %294 = vmatpush1.msra.mxu0 0.0
        %295 = vmatprep.subr.mxu0 0.0
        %296 = vmatpush1.msra.mxu0 0.0
        %297 = vmatprep.subr.mxu0 0.0
        %298 = vmatpush1.msra.mxu0 0.0
        %299 = vmatprep.subr.mxu0 0.0
        %300 = vmatpush1.msra.mxu0 0.0
        %301 = vmatprep.subr.mxu0 0.0
        %302 = vmatpush1.msra.mxu0 0.0
        %303 = vmatprep.subr.mxu0 0.0
        %304 = vmatpush1.msra.mxu0 0.0
        %305 = vmatprep.subr.mxu0 0.0
        %306 = vmatpush1.msra.mxu0 0.0
        %307 = vmatprep.subr.mxu0 0.0
        %308 = vmatpush1.msra.mxu0 0.0
        %309 = vmatprep.subr.mxu0 0.0
        %310 = vmatpush1.msra.mxu0 0.0
        %311 = vmatprep.subr.mxu0 0.0
        %312 = vmatpush1.msra.mxu0 0.0
        %313 = vmatprep.subr.mxu0 0.0
        %314 = vmatpush1.msra.mxu0 0.0
        %315 = vmatprep.subr.mxu0 0.0
        %316 = vmatpush1.msra.mxu0 0.0
        %317 = vmatprep.subr.mxu0 0.0
        %318 = vmatpush1.msra.mxu0 0.0
        %319 = vmatprep.subr.mxu0 0.0
        %320 = vmatpush1.msra.mxu0 0.0
        %321 = vmatprep.subr.mxu0 0.0
        %322 = vmatpush1.msra.mxu0 0.0
        %323 = vmatprep.subr.mxu0 0.0
        %324 = vmatpush1.msra.mxu0 0.0
        %325 = vmatprep.mubr.f32.mxu0 0.0
        %326 = vmatmul.mubr.f32.gmra.mrb[0].mxu0 %v254
        %v327 = vpop.f32.mrb[0].mxu0
        %v328 = vadd.f32 %v247, %v327
        %v329 = vpop.f32.mrb[0].mxu0
        %v330 = vadd.f32 %v247, %v329
        %331 = vdwg.mxu0
        %v332 = vmax.f32 %v328, 0.0
        %v333 = vmax.f32 %v330, 0.0
        %v334 = vld [vmem:[%s2] sm:$0x1]
        %336 = vset.pattern.permute.xlu0 0
        %337 = vperm.xlu0 %336, %v334
        %v338 = vpop.permute.xlu0 %337
        %v340 = vlaneseq
        %v341 = vshrl.u32 %v340, 7
        %v342 = vsub.s32 0, %v341
        %v343 = vrot.slane %v338, %v342
        %v344 = vmul.f32 %v343, %v332
        %v345 = vmul.f32 %v343, %v333
        %346 = vset.pattern.permute.xlu0 8
        %347 = vperm.xlu0 %346, %v334
        %v348 = vpop.permute.xlu0 %347
        %v350 = vlaneseq
        %v351 = vshrl.u32 %v350, 7
        %v352 = vsub.s32 0, %v351
        %v353 = vrot.slane %v348, %v352
        %v354 = vadd.f32 %v353, %v344
        %v355 = vadd.f32 %v353, %v345
        %356 = vset.pattern.permute.xlu0 1
        %357 = vperm.xlu0 %356, %v334
        %v358 = vpop.permute.xlu0 %357
        %v360 = vlaneseq
        %v361 = vshrl.u32 %v360, 7
        %v362 = vsub.s32 0, %v361
        %v363 = vrot.slane %v358, %v362
        %v364 = vmul.f32 %v363, %v332
        %v365 = vmul.f32 %v363, %v333
        %v368 = vrot.slane %v364, 1
        %v369 = vrot.slane %v365, 1
        %v372 = vadd.f32 %v354, %v368
        %v373 = vadd.f32 %v355, %v369
        %374 = vset.pattern.permute.xlu0 2
        %375 = vperm.xlu0 %374, %v334
        %v376 = vpop.permute.xlu0 %375
        %v378 = vlaneseq
        %v379 = vshrl.u32 %v378, 7
        %v380 = vsub.s32 0, %v379
        %v381 = vrot.slane %v376, %v380
        %v382 = vmul.f32 %v381, %v332
        %v383 = vmul.f32 %v381, %v333
        %v386 = vrot.slane %v382, 2
        %v387 = vrot.slane %v383, 2
        %v390 = vadd.f32 %v372, %v386
        %v391 = vadd.f32 %v373, %v387
        %392 = vset.pattern.permute.xlu0 3
        %393 = vperm.xlu0 %392, %v334
        %v394 = vpop.permute.xlu0 %393
        %v396 = vlaneseq
        %v397 = vshrl.u32 %v396, 7
        %v398 = vsub.s32 0, %v397
        %v399 = vrot.slane %v394, %v398
        %v400 = vmul.f32 %v399, %v332
        %v401 = vmul.f32 %v399, %v333
        %v404 = vrot.slane %v400, 3
        %v405 = vrot.slane %v401, 3
        %v408 = vadd.f32 %v390, %v404
        %v409 = vadd.f32 %v391, %v405
        %410 = vset.pattern.permute.xlu0 4
        %411 = vperm.xlu0 %410, %v334
        %v412 = vpop.permute.xlu0 %411
        %v414 = vlaneseq
        %v415 = vshrl.u32 %v414, 7
        %v416 = vsub.s32 0, %v415
        %v417 = vrot.slane %v412, %v416
        %v418 = vmul.f32 %v417, %v332
        %v419 = vmul.f32 %v417, %v333
        %v422 = vrot.slane %v418, 4
        %v423 = vrot.slane %v419, 4
        %v426 = vadd.f32 %v408, %v422
        %v427 = vadd.f32 %v409, %v423
        %428 = vset.pattern.permute.xlu0 5
        %429 = vperm.xlu0 %428, %v334
        %v430 = vpop.permute.xlu0 %429
        %v432 = vlaneseq
        %v433 = vshrl.u32 %v432, 7
        %v434 = vsub.s32 0, %v433
        %v435 = vrot.slane %v430, %v434
        %v436 = vmul.f32 %v435, %v332
        %v437 = vmul.f32 %v435, %v333
        %v440 = vrot.slane %v436, 5
        %v441 = vrot.slane %v437, 5
        %v444 = vadd.f32 %v426, %v440
        %v445 = vadd.f32 %v427, %v441
        %446 = vset.pattern.permute.xlu0 6
        %447 = vperm.xlu0 %446, %v334
        %v448 = vpop.permute.xlu0 %447
        %v450 = vlaneseq
        %v451 = vshrl.u32 %v450, 7
        %v452 = vsub.s32 0, %v451
        %v453 = vrot.slane %v448, %v452
        %v454 = vmul.f32 %v453, %v332
        %v455 = vmul.f32 %v453, %v333
        %v458 = vrot.slane %v454, 6
        %v459 = vrot.slane %v455, 6
        %v462 = vadd.f32 %v444, %v458
        %v463 = vadd.f32 %v445, %v459
        %464 = vset.pattern.permute.xlu0 7
        %465 = vperm.xlu0 %464, %v334
        %v466 = vpop.permute.xlu0 %465
        %v468 = vlaneseq
        %v469 = vshrl.u32 %v468, 7
        %v470 = vsub.s32 0, %v469
        %v471 = vrot.slane %v466, %v470
        %v472 = vmul.f32 %v471, %v332
        %v473 = vmul.f32 %v471, %v333
        %v476 = vrot.slane %v472, 7
        %v477 = vrot.slane %v473, 7
        %v480 = vadd.f32 %v462, %v476
        %v481 = vadd.f32 %v463, %v477
        %v482 = vmul.f32 %v480, 2.0
        %v483 = vmul.f32 %v481, 2.0
        %v484 = vtanh.pop %v482
        %v485 = vtanh.pop %v483
        %v486 = vmul.f32 %v241, 1.75
        %v487 = vmul.f32 %v242, 1.75
        %v488 = vadd.f32 %v486, 3.5
        %v489 = vadd.f32 %v487, 3.5
        %v490 = vmax.f32 %v488, 0.0
        %v491 = vmax.f32 %v489, 0.0
        %v492 = vmin.f32 %v490, 7.0
        %v493 = vmin.f32 %v491, 7.0
        %v494 = vlaneseq
        %v495 = vshrl.u32 %v494, 7
        %v496 = vcvt.s32.f32 %v495
        %v497 = vlaneseq
        %v498 = vshrl.u32 %v497, 7
        %v499 = vsub.s32 0, %v498
        %v500 = vrot.slane %v492, %v499
        %v501 = vlaneseq
        %v502 = vshrl.u32 %v501, 7
        %v503 = vsub.s32 0, %v502
        %v504 = vrot.slane %v493, %v503
        %v505 = vsub.f32 %v500, %v496
        %v506 = vsub.f32 %v504, %v496
        %v507 = vand.u32 2147483647, %v505
        %v508 = vand.u32 2147483647, %v506
        %v509 = vsub.f32 1.0, %v507
        %v510 = vsub.f32 1.0, %v508
        %v511 = vmax.f32 %v509, 0.0
        %v512 = vmax.f32 %v510, 0.0
        %513 = vst [vmem:[#allocation2] sm:$0xff] %v511
        %514 = vst [vmem:[#allocation2 + $0x8] sm:$0xff] %v512
        %v515 = vmul.f32 %v241, 3.75
        %v516 = vmul.f32 %v242, 3.75
        %v517 = vadd.f32 %v515, 7.5
        %v518 = vadd.f32 %v516, 7.5
        %v519 = vmax.f32 %v517, 0.0
        %v520 = vmax.f32 %v518, 0.0
        %v521 = vmin.f32 %v519, 15.0
        %v522 = vmin.f32 %v520, 15.0
        %v523 = vadd.s32 %v495, 8
        %v524 = vcvt.s32.f32 %v523
        %v525 = vlaneseq
        %v526 = vshrl.u32 %v525, 7
        %v527 = vsub.s32 1, %v526
        %v528 = vrot.slane %v521, %v527
        %v529 = vlaneseq
        %v530 = vshrl.u32 %v529, 7
        %v531 = vsub.s32 1, %v530
        %v532 = vrot.slane %v522, %v531
        %v533 = vsub.f32 %v528, %v496
        %v534 = vsub.f32 %v532, %v496
        %v535 = vsub.f32 %v528, %v524
        %v536 = vsub.f32 %v532, %v524
        %v537 = vand.u32 2147483647, %v533
        %v538 = vand.u32 2147483647, %v534
        %v539 = vand.u32 2147483647, %v535
        %v540 = vand.u32 2147483647, %v536
        %v541 = vsub.f32 1.0, %v537
        %v542 = vsub.f32 1.0, %v538
        %v543 = vsub.f32 1.0, %v539
        %v544 = vsub.f32 1.0, %v540
        %v545 = vmax.f32 %v541, 0.0
        %v546 = vmax.f32 %v542, 0.0
        %v547 = vmax.f32 %v543, 0.0
        %v548 = vmax.f32 %v544, 0.0
        %549 = vst [vmem:[#allocation2 + $0x10] sm:$0xff] %v545
        %550 = vst [vmem:[#allocation2 + $0x18] sm:$0xff] %v546
        %551 = vst [vmem:[#allocation2 + $0x20] sm:$0xff] %v547
        %552 = vst [vmem:[#allocation2 + $0x28] sm:$0xff] %v548
        %v553 = vlaneseq
        %v554 = vshrl.u32 %v553, 7
        %v555 = vsub.s32 2, %v554
        %v556 = vrot.slane %v521, %v555
        %v557 = vlaneseq
        %v558 = vshrl.u32 %v557, 7
        %v559 = vsub.s32 2, %v558
        %v560 = vrot.slane %v522, %v559
        %v561 = vsub.f32 %v556, %v496
        %v562 = vsub.f32 %v560, %v496
        %v563 = vsub.f32 %v556, %v524
        %v564 = vsub.f32 %v560, %v524
        %v565 = vand.u32 2147483647, %v561
        %v566 = vand.u32 2147483647, %v562
        %v567 = vand.u32 2147483647, %v563
        %v568 = vand.u32 2147483647, %v564
        %v569 = vsub.f32 1.0, %v565
        %v570 = vsub.f32 1.0, %v566
        %v571 = vsub.f32 1.0, %v567
        %v572 = vsub.f32 1.0, %v568
        %v573 = vmax.f32 %v569, 0.0
        %v574 = vmax.f32 %v570, 0.0
        %v575 = vmax.f32 %v571, 0.0
        %v576 = vmax.f32 %v572, 0.0
        %577 = vst [vmem:[#allocation2 + $0x30] sm:$0xff] %v573
        %578 = vst [vmem:[#allocation2 + $0x38] sm:$0xff] %v574
        %579 = vst [vmem:[#allocation2 + $0x40] sm:$0xff] %v575
        %580 = vst [vmem:[#allocation2 + $0x48] sm:$0xff] %v576
        %v581 = vmul.f32 %v484, 7.5
        %v582 = vmul.f32 %v485, 7.5
        %v583 = vadd.f32 %v581, 7.5
        %v584 = vadd.f32 %v582, 7.5
        %v585 = vmax.f32 %v583, 0.0
        %v586 = vmax.f32 %v584, 0.0
        %v587 = vmin.f32 %v585, 15.0
        %v588 = vmin.f32 %v586, 15.0
        %v589 = vlaneseq
        %v590 = vshrl.u32 %v589, 7
        %v591 = vsub.s32 0, %v590
        %v592 = vrot.slane %v587, %v591
        %v593 = vlaneseq
        %v594 = vshrl.u32 %v593, 7
        %v595 = vsub.s32 0, %v594
        %v596 = vrot.slane %v588, %v595
        %v597 = vsub.f32 %v592, %v496
        %v598 = vsub.f32 %v596, %v496
        %v599 = vsub.f32 %v592, %v524
        %v600 = vsub.f32 %v596, %v524
        %v601 = vand.u32 2147483647, %v597
        %v602 = vand.u32 2147483647, %v598
        %v603 = vand.u32 2147483647, %v599
        %v604 = vand.u32 2147483647, %v600
        %v605 = vsub.f32 1.0, %v601
        %v606 = vsub.f32 1.0, %v602
        %v607 = vsub.f32 1.0, %v603
        %v608 = vsub.f32 1.0, %v604
        %v609 = vmax.f32 %v605, 0.0
        %v610 = vmax.f32 %v606, 0.0
        %v611 = vmax.f32 %v607, 0.0
        %v612 = vmax.f32 %v608, 0.0
        %613 = vst [vmem:[#allocation2 + $0x50] sm:$0xff] %v609
        %614 = vst [vmem:[#allocation2 + $0x58] sm:$0xff] %v610
        %615 = vst [vmem:[#allocation2 + $0x60] sm:$0xff] %v611
        %616 = vst [vmem:[#allocation2 + $0x68] sm:$0xff] %v612
        %v617 = vld [vmem:[#allocation3] sm:$0xff]
        %v618 = vld [vmem:[#allocation3 + $0x8] sm:$0xff]
        %v619 = vld [vmem:[#allocation3 + $0x10] sm:$0xff]
        %v620 = vld [vmem:[#allocation3 + $0x18] sm:$0xff]
        %v621 = vld [vmem:[%s4] sm:$0xff]
        %v622 = vld [vmem:[%s4 + $0x8] sm:$0xf]
        %v623 = vld [vmem:[#allocation2] sm:$0xff]
        %v624 = vld [vmem:[#allocation2 + $0x8] sm:$0xff]
        %v625 = vld [vmem:[#allocation2 + $0x10] sm:$0xff]
        %v626 = vld [vmem:[#allocation2 + $0x18] sm:$0xff]
        %v627 = vld [vmem:[#allocation2 + $0x20] sm:$0xff]
        %v628 = vld [vmem:[#allocation2 + $0x28] sm:$0xff]
        %v629 = vld [vmem:[#allocation2 + $0x30] sm:$0xff]
        %v630 = vld [vmem:[#allocation2 + $0x38] sm:$0xff]
        %v631 = vld [vmem:[#allocation2 + $0x40] sm:$0xff]
        %v632 = vld [vmem:[#allocation2 + $0x48] sm:$0xff]
        %v633 = vld [vmem:[#allocation2 + $0x50] sm:$0xff]
        %v634 = vld [vmem:[#allocation2 + $0x58] sm:$0xff]
        %v635 = vld [vmem:[#allocation2 + $0x60] sm:$0xff]
        %v636 = vld [vmem:[#allocation2 + $0x68] sm:$0xff]
        %vm637 = vcmask 457728
        %v639 = vsel %vm637, %v617, 0
        %v642 = vsel %vm637, %v618, 0
        %v645 = vsel %vm637, %v619, 0
        %v648 = vsel %vm637, %v620, 0
        %650 = vmatprep.subr.mxu0 %v624
        %651 = vmatpush1.msra.mxu0 %v623
        %652 = vmatprep.subr.mxu0 %v626
        %653 = vmatpush1.msra.mxu0 %v625
        %654 = vmatprep.subr.mxu0 %v628
        %655 = vmatpush1.msra.mxu0 %v627
        %656 = vmatprep.subr.mxu0 %v630
        %657 = vmatpush1.msra.mxu0 %v629
        %658 = vmatprep.subr.mxu0 %v632
        %659 = vmatpush1.msra.mxu0 %v631
        %660 = vmatprep.subr.mxu0 %v634
        %661 = vmatpush1.msra.mxu0 %v633
        %662 = vmatprep.subr.mxu0 %v636
        %663 = vmatpush1.msra.mxu0 %v635
        %664 = vmatprep.subr.mxu0 0.0
        %665 = vmatpush1.msra.mxu0 0.0
        %666 = vmatprep.subr.mxu0 0.0
        %667 = vmatpush1.msra.mxu0 0.0
        %668 = vmatprep.subr.mxu0 0.0
        %669 = vmatpush1.msra.mxu0 0.0
        %670 = vmatprep.subr.mxu0 0.0
        %671 = vmatpush1.msra.mxu0 0.0
        %672 = vmatprep.subr.mxu0 0.0
        %673 = vmatpush1.msra.mxu0 0.0
        %674 = vmatprep.subr.mxu0 0.0
        %675 = vmatpush1.msra.mxu0 0.0
        %676 = vmatprep.subr.mxu0 0.0
        %677 = vmatpush1.msra.mxu0 0.0
        %678 = vmatprep.subr.mxu0 0.0
        %679 = vmatpush1.msra.mxu0 0.0
        %680 = vmatprep.subr.mxu0 0.0
        %681 = vmatpush1.msra.mxu0 0.0
        %682 = vmatprep.subr.mxu0 0.0
        %683 = vmatpush1.msra.mxu0 0.0
        %684 = vmatprep.subr.mxu0 0.0
        %685 = vmatpush1.msra.mxu0 0.0
        %686 = vmatprep.subr.mxu0 0.0
        %687 = vmatpush1.msra.mxu0 0.0
        %688 = vmatprep.subr.mxu0 0.0
        %689 = vmatpush1.msra.mxu0 0.0
        %690 = vmatprep.subr.mxu0 0.0
        %691 = vmatpush1.msra.mxu0 0.0
        %692 = vmatprep.subr.mxu0 0.0
        %693 = vmatpush1.msra.mxu0 0.0
        %694 = vmatprep.subr.mxu0 0.0
        %695 = vmatpush1.msra.mxu0 0.0
        %696 = vmatprep.subr.mxu0 0.0
        %697 = vmatpush1.msra.mxu0 0.0
        %698 = vmatprep.subr.mxu0 0.0
        %699 = vmatpush1.msra.mxu0 0.0
        %700 = vmatprep.subr.mxu0 0.0
        %701 = vmatpush1.msra.mxu0 0.0
        %702 = vmatprep.subr.mxu0 0.0
        %703 = vmatpush1.msra.mxu0 0.0
        %704 = vmatprep.subr.mxu0 0.0
        %705 = vmatpush1.msra.mxu0 0.0
        %706 = vmatprep.subr.mxu0 0.0
        %707 = vmatpush1.msra.mxu0 0.0
        %708 = vmatprep.subr.mxu0 0.0
        %709 = vmatpush1.msra.mxu0 0.0
        %710 = vmatprep.subr.mxu0 0.0
        %711 = vmatpush1.msra.mxu0 0.0
        %712 = vmatprep.subr.mxu0 0.0
        %713 = vmatpush1.msra.mxu0 0.0
        %714 = vmatprep.mubr.f32.mxu0 0.0
        %715 = vmatmul.mubr.f32.gmra.mrb[0].mxu0 %v639
        %v716 = vpop.f32.mrb[0].mxu0
        %v717 = vadd.f32 0.0, %v716
        %v718 = vpop.f32.mrb[0].mxu0
        %v719 = vadd.f32 0.0, %v718
        %720 = vmatprep.mubr.f32.mxu0 0.0
        %721 = vmatmul.mubr.f32.gmra.mrb[0].mxu0 %v642
        %v722 = vpop.f32.mrb[0].mxu0
        %v723 = vadd.f32 0.0, %v722
        %v724 = vpop.f32.mrb[0].mxu0
        %v725 = vadd.f32 0.0, %v724
        %726 = vmatprep.mubr.f32.mxu0 0.0
        %727 = vmatmul.mubr.f32.gmra.mrb[0].mxu0 %v645
        %v728 = vpop.f32.mrb[0].mxu0
        %v729 = vadd.f32 0.0, %v728
        %v730 = vpop.f32.mrb[0].mxu0
        %v731 = vadd.f32 0.0, %v730
        %732 = vmatprep.mubr.f32.mxu0 0.0
        %733 = vmatmul.mubr.f32.gmra.mrb[0].mxu0 %v648
        %v734 = vpop.f32.mrb[0].mxu0
        %v735 = vadd.f32 0.0, %v734
        %v736 = vpop.f32.mrb[0].mxu0
        %v737 = vadd.f32 0.0, %v736
        %738 = vdwg.mxu0
        %v739 = vmul.f32 %v717, %v723
        %v740 = vmul.f32 %v719, %v725
        %v741 = vmul.f32 %v739, %v729
        %v742 = vmul.f32 %v740, %v731
        %v743 = vmul.f32 %v741, %v735
        %v744 = vmul.f32 %v742, %v737
        %vm745 = vcmask 64512
        %v747 = vsel %vm745, %v621, 0
        %v750 = vsel %vm745, %v622, 0
        %752 = vmatprep.subr.mxu0 %v744
        %753 = vmatpush1.msra.mxu0 %v743
        %754 = vmatprep.subr.mxu0 0.0
        %755 = vmatpush1.msra.mxu0 0.0
        %756 = vmatprep.subr.mxu0 0.0
        %757 = vmatpush1.msra.mxu0 0.0
        %758 = vmatprep.subr.mxu0 0.0
        %759 = vmatpush1.msra.mxu0 0.0
        %760 = vmatprep.subr.mxu0 0.0
        %761 = vmatpush1.msra.mxu0 0.0
        %762 = vmatprep.subr.mxu0 0.0
        %763 = vmatpush1.msra.mxu0 0.0
        %764 = vmatprep.subr.mxu0 0.0
        %765 = vmatpush1.msra.mxu0 0.0
        %766 = vmatprep.subr.mxu0 0.0
        %767 = vmatpush1.msra.mxu0 0.0
        %768 = vmatprep.subr.mxu0 0.0
        %769 = vmatpush1.msra.mxu0 0.0
        %770 = vmatprep.subr.mxu0 0.0
        %771 = vmatpush1.msra.mxu0 0.0
        %772 = vmatprep.subr.mxu0 0.0
        %773 = vmatpush1.msra.mxu0 0.0
        %774 = vmatprep.subr.mxu0 0.0
        %775 = vmatpush1.msra.mxu0 0.0
        %776 = vmatprep.subr.mxu0 0.0
        %777 = vmatpush1.msra.mxu0 0.0
        %778 = vmatprep.subr.mxu0 0.0
        %779 = vmatpush1.msra.mxu0 0.0
        %780 = vmatprep.subr.mxu0 0.0
        %781 = vmatpush1.msra.mxu0 0.0
        %782 = vmatprep.subr.mxu0 0.0
        %783 = vmatpush1.msra.mxu0 0.0
        %784 = vmatprep.subr.mxu0 0.0
        %785 = vmatpush1.msra.mxu0 0.0
        %786 = vmatprep.subr.mxu0 0.0
        %787 = vmatpush1.msra.mxu0 0.0
        %788 = vmatprep.subr.mxu0 0.0
        %789 = vmatpush1.msra.mxu0 0.0
        %790 = vmatprep.subr.mxu0 0.0
        %791 = vmatpush1.msra.mxu0 0.0
        %792 = vmatprep.subr.mxu0 0.0
        %793 = vmatpush1.msra.mxu0 0.0
        %794 = vmatprep.subr.mxu0 0.0
        %795 = vmatpush1.msra.mxu0 0.0
        %796 = vmatprep.subr.mxu0 0.0
        %797 = vmatpush1.msra.mxu0 0.0
        %798 = vmatprep.subr.mxu0 0.0
        %799 = vmatpush1.msra.mxu0 0.0
        %800 = vmatprep.subr.mxu0 0.0
        %801 = vmatpush1.msra.mxu0 0.0
        %802 = vmatprep.subr.mxu0 0.0
        %803 = vmatpush1.msra.mxu0 0.0
        %804 = vmatprep.subr.mxu0 0.0
        %805 = vmatpush1.msra.mxu0 0.0
        %806 = vmatprep.subr.mxu0 0.0
        %807 = vmatpush1.msra.mxu0 0.0
        %808 = vmatprep.subr.mxu0 0.0
        %809 = vmatpush1.msra.mxu0 0.0
        %810 = vmatprep.subr.mxu0 0.0
        %811 = vmatpush1.msra.mxu0 0.0
        %812 = vmatprep.subr.mxu0 0.0
        %813 = vmatpush1.msra.mxu0 0.0
        %814 = vmatprep.subr.mxu0 0.0
        %815 = vmatpush1.msra.mxu0 0.0
        %816 = vmatprep.mubr.f32.mxu0 0.0
        %817 = vmatmul.mubr.f32.gmra.mrb[0].mxu0 %v747
        %v818 = vpop.f32.mrb[0].mxu0
        %v819 = vadd.f32 0.0, %v818
        %v820 = vpop.f32.mrb[0].mxu0
        %v821 = vadd.f32 0.0, %v820
        %822 = vmatprep.mubr.f32.mxu0 0.0
        %823 = vmatmul.mubr.f32.gmra.mrb[0].mxu0 %v750
        %v824 = vpop.f32.mrb[0].mxu0
        %v825 = vadd.f32 0.0, %v824
        %v826 = vpop.f32.mrb[0].mxu0
        %v827 = vadd.f32 0.0, %v826
        %828 = vdwg.mxu0
        %829 = vst [vmem:[%s233] sm:$0xff] %v819
        %830 = vst [vmem:[%s233 + $0x8] sm:$0xff] %v821
        %831 = vst [vmem:[%s233 + $0x10] sm:$0xf] %v825
        %832 = vst [vmem:[%s233 + $0x18] sm:$0xf] %v827
        %s833 = sand.u32 %s138, 1
        %s834 = scalar_lea.sflag [#allocation5], %s833
        %s835 = sand.u32 %s138, 1
        %s836 = smul.addr %s835, 32
        %s837 = scalar_lea.vmem [#allocation6], %s836
        // Predicated region
        $region45: #{tpu_custom_call.1} parent=39 // pred_check
          %p838 = pneg %p148
        $region46: #{tpu_custom_call.1} parent=39 // pred_check_branch
          %840 = sbr.rel (%p838) target = $region48
        $region47: #{tpu_custom_call.1} parent=39 // pred_region
          %s841 = smul.u32 2, %s20
          %s843 = ssub.s32 512, 512
          %844 = vsyncadd %s834, %s843
          %s845 = smul.addr %s841, 128
          %s846 = scalar_lea.hbm %s5, %s845
          %s847 = sshll.u32 %s837, 4
          %s848 = int_to_ptr.vmem [resolvable:$true] %s847
          %853 = dma.vmem_to_hbm [thread:$0]  %s848, 512, %s846, %s834, 256, 512, 16
        $region48: #{tpu_custom_call.1} parent=39 // pred_fallthru
          _
      $region40: #{tpu_custom_call.1} parent=5 // pred_fallthru
        _
      %p854 = scmp.le.s32.totalorder 2, %s15
      // Predicated region
      $region49: #{tpu_custom_call.1} parent=5 // pred_check
        %p855 = pneg %p854
      $region50: #{tpu_custom_call.1} parent=5 // pred_check_branch
        %857 = sbr.rel (%p855) target = $region52
      $region51: #{tpu_custom_call.1} parent=5 // pred_region
        %s858 = ssub.s32 %s15, 2
        // Predicated region
        $region53: #{tpu_custom_call.1} parent=51 // pred_check
          %p859 = pneg %p154
        $region54: #{tpu_custom_call.1} parent=51 // pred_check_branch
          %861 = sbr.rel (%p859) target = $region56
        $region55: #{tpu_custom_call.1} parent=51 // pred_region
          %s862 = sand.u32 %s139, 1
          %s863 = scalar_lea.sflag [#allocation5], %s862
          %s864 = sand.u32 %s139, 1
          %s865 = smul.addr %s864, 32
          %s866 = scalar_lea.vmem [#allocation6], %s865
          %867 = dma.done %s863, 512
        $region56: #{tpu_custom_call.1} parent=51 // pred_fallthru
          _
      $region52: #{tpu_custom_call.1} parent=5 // pred_fallthru
        _
    $region6: #{tpu_custom_call.1} parent=1 // loop_footer
      %s19 = sadd.s32 1, %s15
    $region7: #{tpu_custom_call.1} parent=1 // loop_footer_branch
      %14 = sbr.rel target = $region3
    $region8: #{tpu_custom_call.1} parent=1 // loop_exit
      _
    %868 = vsyncpa [#allocation4], 1
    %s869 = scalar_lea.sflag [#allocation4], 1
    %870 = vsyncpa %s869, 1
    %871 = vsyncpa [#allocation5], 1
    %s872 = scalar_lea.sflag [#allocation5], 1
    %873 = vsyncpa %s872, 1

</llo_original>
